<compile_context>
chip_gen: v7x
topology: tpu7x:2x2x1
jax: 0.10.0
libtpu: 0.0.40
codegen_flags: <defaults>
</compile_context>

<pallas_src>
import functools

import jax
import jax.numpy as jnp
import numpy as np
from jax.experimental import pallas as pl
from jax.experimental.pallas import tpu as pltpu


def _round_up(x, m):
    return ((x + m - 1) // m) * m


def _latent_cls_head_kernel(x_ref, t_ref, wt_ref, b_ref, out_ref, *,
                            n_true, tile_n):
    w = wt_ref[...]        # (C, Kp) bf16, resident, single-buffered
    b = b_ref[...]         # (1, Kp) f32, -1e30 sentinel on padded classes

    # Two MXU pushes against the same resident RHS (no concat copy), f32 acc.
    pred = jnp.dot(x_ref[...], w, preferred_element_type=jnp.float32) + b
    tgt = jnp.dot(t_ref[...], w, preferred_element_type=jnp.float32) + b

    n, kp = pred.shape
    col = jax.lax.broadcasted_iota(jnp.int32, (n, kp), 1)

    # argmax(target logits, axis=1): index of the first maximum (torch semantics).
    tgt_max = jnp.max(tgt, axis=1, keepdims=True)
    label = jnp.min(jnp.where(tgt == tgt_max, col, kp), axis=1, keepdims=True)

    # pred[row, label[row]] as a masked sum (no one-hot matmul).
    picked = jnp.sum(jnp.where(col == label, pred, 0.0), axis=1, keepdims=True)

    # Numerically stable logsumexp over classes (f32).
    m = jnp.max(pred, axis=1, keepdims=True)
    lse = m + jnp.log(jnp.sum(jnp.exp(pred - m), axis=1, keepdims=True))

    per_row = lse - picked                                    # (tile_n, 1)

    if n_true % tile_n != 0:
        # Only the ragged last tile carries out-of-range rows; mask them.
        row = (pl.program_id(0) * tile_n
               + jax.lax.broadcasted_iota(jnp.int32, (n, 1), 0))
        per_row = jnp.where(row < n_true, per_row, 0.0)

    # Per-tile partial loss sum, broadcast into a lane-dense (1, 128) row.
    partial = jnp.sum(per_row, axis=0, keepdims=True)         # (1, 1)
    out_ref[...] = jnp.broadcast_to(partial, out_ref.shape)


def latent_cls_head_forward(inp, target, weight, bias, *, tile_n=None):
    """LatentClsHead forward. inp/target: (N, C); weight: (K, C); bias: (K,)."""
    n_true, c = inp.shape
    k = weight.shape[0]
    kp = _round_up(k, 128)

    # TODO(synk): hoist the W^T/bias packing out of the per-call path when the
    # head is invoked repeatedly with the same parameters (pure data reshuffle).
    w_t = jnp.zeros((c, kp), jnp.bfloat16).at[:, :k].set(
        weight.T.astype(jnp.bfloat16))
    b2 = jnp.full((1, kp), -1e30, dtype=jnp.float32)
    b2 = b2.at[0, :k].set(bias.astype(jnp.float32))

    # bf16 streaming tiles; everything after the f32-accumulated dots is f32.
    x = inp.astype(jnp.bfloat16)
    t = target.astype(jnp.bfloat16)

    # VMEM budget: resident single-buffered W^T + bias, double-buffered bf16
    # x/t tiles, and the (tile_n, Kp) f32 logits/exp temps for both matmuls.
    vmem_limit = 32 * 1024 * 1024          # raise v5e's 16 MiB scoped default
    if tile_n is None:
        resident = c * kp * 2 + kp * 4 + 2 * 128 * 4
        per_row = 2 * 2 * c * 2 + 4 * kp * 4   # x/t (2 bufs each) + f32 temps
        budget = max(vmem_limit - (4 << 20) - resident, 8 * per_row)
        tile_n = max(8, min(2048, budget // per_row))
    tile_n = max(8, min(int(tile_n), _round_up(n_true, 8)))
    tile_n = max(8, (tile_n // 8) * 8)

    num_tiles = pl.cdiv(n_true, tile_n)    # no jnp.pad: ragged tail is masked

    kernel = functools.partial(_latent_cls_head_kernel,
                               n_true=n_true, tile_n=tile_n)

    partials = pl.pallas_call(
        kernel,
        out_shape=jax.ShapeDtypeStruct((num_tiles, 128), jnp.float32),
        grid_spec=pltpu.PrefetchScalarGridSpec(
            num_scalar_prefetch=0,
            grid=(num_tiles,),
            in_specs=[
                pl.BlockSpec((tile_n, c), lambda i: (i, 0)),     # input tile
                pl.BlockSpec((tile_n, c), lambda i: (i, 0)),     # target tile
                pl.BlockSpec((c, kp), lambda i: (0, 0),          # W^T resident
                             pipeline_mode=pl.Buffered(1)),
                pl.BlockSpec((1, kp), lambda i: (0, 0),          # bias resident
                             pipeline_mode=pl.Buffered(1)),
            ],
            out_specs=pl.BlockSpec((1, 128), lambda i: (i, 0)),  # per-tile partial
        ),
        compiler_params=pltpu.CompilerParams(
            dimension_semantics=("parallel",),   # independent per-tile outputs
            vmem_limit_bytes=vmem_limit,
        ),
    )(x, t, w_t, b2)

    # Final reduction + mean in the wrapper (keeps the batch axis parallel and
    # avoids cross-tile f32 accumulation drift for very large N).
    loss = jnp.sum(partials[:, 0]) * (1.0 / n_true)
    return dict(loss=loss)


def _reference(inp, target, weight, bias):
    """Pure-JAX reference with the same bf16-input / f32-accumulate numerics."""
    w_bf = weight.astype(jnp.bfloat16)
    pred = jnp.dot(inp.astype(jnp.bfloat16), w_bf.T,
                   preferred_element_type=jnp.float32) + bias
    tgt = jnp.dot(target.astype(jnp.bfloat16), w_bf.T,
                  preferred_element_type=jnp.float32) + bias
    label = jnp.argmax(tgt, axis=1)
    logp = jax.nn.log_softmax(pred, axis=1)
    return -jnp.mean(jnp.take_along_axis(logp, label[:, None], axis=1))


if __name__ == "__main__":
    # Small shapes consistent with the module: N x C features, K classes.
    N, C, K = 8, 32, 16

    key = jax.random.PRNGKey(0)
    k_in, k_tgt, k_w = jax.random.split(key, 3)

    inp = jax.random.normal(k_in, (N, C), dtype=jnp.float32)
    target = jax.random.normal(k_tgt, (N, C), dtype=jnp.float32)

    # normal_init(self.predictor, std=0.01): weight ~ N(0, 0.01), bias = 0.
    weight = 0.01 * jax.random.normal(k_w, (K, C), dtype=jnp.float32)
    bias = jnp.zeros((K,), dtype=jnp.float32)

    out = latent_cls_head_forward(inp, target, weight, bias)
    loss = jax.block_until_ready(out["loss"])

    ref = _reference(inp, target, weight, bias)
    assert np.allclose(np.asarray(loss), np.asarray(ref), rtol=1e-4, atol=1e-4), (
        loss, ref)

    print("KERNEL_OK")
</pallas_src>

<mosaic_0001>
module attributes {stable_mosaic.version = 11 : i64} {
  func.func @_latent_cls_head_kernel(%arg0: i32, %arg1: memref<8x32xbf16, #tpu.memory_space<vmem>>, %arg2: memref<8x32xbf16, #tpu.memory_space<vmem>>, %arg3: memref<32x128xbf16, #tpu.memory_space<vmem>>, %arg4: memref<1x128xf32, #tpu.memory_space<vmem>>, %arg5: memref<1x128xf32, #tpu.memory_space<vmem>>) attributes {dimension_semantics = [#tpu.dimension_semantics<parallel>], iteration_bounds = array<i64: 1>, scalar_prefetch = 0 : i64, scratch_operands = 0 : i64, tpu.core_type = #tpu.core_type<tc>, window_params = [{transform_indices = @transform_0, window_bounds = array<i64: 8, 32>}, {transform_indices = @transform_1, window_bounds = array<i64: 8, 32>}, {pipeline_mode = #tpu.pipeline_mode<synchronous>, transform_indices = @transform_2, window_bounds = array<i64: 32, 128>}, {pipeline_mode = #tpu.pipeline_mode<synchronous>, transform_indices = @transform_3, window_bounds = array<i64: 1, 128>}, {transform_indices = @transform_4, window_bounds = array<i64: 1, 128>}]} {
    %c0 = arith.constant 0 : index
    %c0_0 = arith.constant 0 : index
    %0 = vector.load %arg3[%c0, %c0_0] : memref<32x128xbf16, #tpu.memory_space<vmem>>, vector<32x128xbf16>
    %c0_1 = arith.constant 0 : index
    %c0_2 = arith.constant 0 : index
    %1 = vector.load %arg4[%c0_1, %c0_2] : memref<1x128xf32, #tpu.memory_space<vmem>>, vector<1x128xf32>
    %c0_3 = arith.constant 0 : index
    %c0_4 = arith.constant 0 : index
    %2 = vector.load %arg1[%c0_3, %c0_4] : memref<8x32xbf16, #tpu.memory_space<vmem>>, vector<8x32xbf16>
    %cst = arith.constant dense<0.000000e+00> : vector<8x128xf32>
    %3 = tpu.matmul %2, %0, %cst {dimension_numbers = #tpu.dot_dimension_numbers<[1], [0], [0], [1], [0, 0, 1, 1], [], []>} : vector<8x32xbf16>, vector<32x128xbf16>, vector<8x128xf32> -> vector<8x128xf32>
    %4 = vector.broadcast %1 : vector<1x128xf32> to vector<8x128xf32>
    %5 = arith.addf %3, %4 : vector<8x128xf32>
    %c0_5 = arith.constant 0 : index
    %c0_6 = arith.constant 0 : index
    %6 = vector.load %arg2[%c0_5, %c0_6] : memref<8x32xbf16, #tpu.memory_space<vmem>>, vector<8x32xbf16>
    %cst_7 = arith.constant dense<0.000000e+00> : vector<8x128xf32>
    %7 = tpu.matmul %6, %0, %cst_7 {dimension_numbers = #tpu.dot_dimension_numbers<[1], [0], [0], [1], [0, 0, 1, 1], [], []>} : vector<8x32xbf16>, vector<32x128xbf16>, vector<8x128xf32> -> vector<8x128xf32>
    %8 = vector.broadcast %1 : vector<1x128xf32> to vector<8x128xf32>
    %9 = arith.addf %7, %8 : vector<8x128xf32>
    %10 = tpu.iota {dimensions = array<i32: 1>} : vector<8x128xi32>
    %cst_8 = arith.constant dense<0xFF800000> : vector<8xf32>
    %11 = vector.multi_reduction <maximumf>, %9, %cst_8 [1] : vector<8x128xf32> to vector<8xf32>
    %12 = vector.shape_cast %11 : vector<8xf32> to vector<8x1xf32>
    %13 = vector.broadcast %12 : vector<8x1xf32> to vector<8x128xf32>
    %14 = arith.cmpf oeq, %9, %13 : vector<8x128xf32>
    %c128_i32 = arith.constant 128 : i32
    %15 = vector.broadcast %c128_i32 : i32 to vector<8x128xi32>
    %16 = arith.select %14, %10, %15 : vector<8x128xi1>, vector<8x128xi32>
    %cst_9 = arith.constant dense<2147483647> : vector<8xi32>
    %17 = vector.multi_reduction <minsi>, %16, %cst_9 [1] : vector<8x128xi32> to vector<8xi32>
    %18 = vector.shape_cast %17 : vector<8xi32> to vector<8x1xi32>
    %19 = vector.broadcast %18 : vector<8x1xi32> to vector<8x128xi32>
    %20 = arith.cmpi eq, %10, %19 : vector<8x128xi32>
    %cst_10 = arith.constant 0.000000e+00 : f32
    %21 = vector.broadcast %cst_10 : f32 to vector<8x128xf32>
    %22 = arith.select %20, %5, %21 : vector<8x128xi1>, vector<8x128xf32>
    %cst_11 = arith.constant dense<0.000000e+00> : vector<8xf32>
    %23 = vector.multi_reduction <add>, %22, %cst_11 [1] : vector<8x128xf32> to vector<8xf32>
    %24 = vector.shape_cast %23 : vector<8xf32> to vector<8x1xf32>
    %cst_12 = arith.constant dense<0xFF800000> : vector<8xf32>
    %25 = vector.multi_reduction <maximumf>, %5, %cst_12 [1] : vector<8x128xf32> to vector<8xf32>
    %26 = vector.shape_cast %25 : vector<8xf32> to vector<8x1xf32>
    %27 = vector.broadcast %26 : vector<8x1xf32> to vector<8x128xf32>
    %28 = arith.subf %5, %27 : vector<8x128xf32>
    %29 = math.exp %28 : vector<8x128xf32>
    %cst_13 = arith.constant dense<0.000000e+00> : vector<8xf32>
    %30 = vector.multi_reduction <add>, %29, %cst_13 [1] : vector<8x128xf32> to vector<8xf32>
    %31 = vector.shape_cast %30 : vector<8xf32> to vector<8x1xf32>
    %32 = math.log %31 : vector<8x1xf32>
    %33 = arith.addf %26, %32 : vector<8x1xf32>
    %34 = arith.subf %33, %24 : vector<8x1xf32>
    %cst_14 = arith.constant dense<0.000000e+00> : vector<1xf32>
    %35 = vector.multi_reduction <add>, %34, %cst_14 [0] : vector<8x1xf32> to vector<1xf32>
    %36 = vector.shape_cast %35 : vector<1xf32> to vector<1x1xf32>
    %37 = vector.shape_cast %36 : vector<1x1xf32> to vector<1x1xf32>
    %38 = vector.broadcast %37 : vector<1x1xf32> to vector<1x128xf32>
    %c0_15 = arith.constant 0 : index
    %c0_16 = arith.constant 0 : index
    %39 = vector.load %arg5[%c0_15, %c0_16] : memref<1x128xf32, #tpu.memory_space<vmem>>, vector<1x128xf32>
    tpu.vector_store %arg5[%c0_15, %c0_16], %38 {strides = array<i32>} : memref<1x128xf32, #tpu.memory_space<vmem>>, vector<1x128xf32>,
    return
  }
  func.func @transform_0(%arg0: i32) -> (i32, i32) {
    %c0_i32 = arith.constant 0 : i32
    %c0_i32_0 = arith.constant 0 : i32
    return %arg0, %c0_i32 : i32, i32
  }
  func.func @transform_1(%arg0: i32) -> (i32, i32) {
    %c0_i32 = arith.constant 0 : i32
    %c0_i32_0 = arith.constant 0 : i32
    return %arg0, %c0_i32 : i32, i32
  }
  func.func @transform_2(%arg0: i32) -> (i32, i32) {
    %c0_i32 = arith.constant 0 : i32
    %c0_i32_0 = arith.constant 0 : i32
    %c0_i32_1 = arith.constant 0 : i32
    return %c0_i32, %c0_i32_0 : i32, i32
  }
  func.func @transform_3(%arg0: i32) -> (i32, i32) {
    %c0_i32 = arith.constant 0 : i32
    %c0_i32_0 = arith.constant 0 : i32
    %c0_i32_1 = arith.constant 0 : i32
    return %c0_i32, %c0_i32_0 : i32, i32
  }
  func.func @transform_4(%arg0: i32) -> (i32, i32) {
    %c0_i32 = arith.constant 0 : i32
    %c0_i32_0 = arith.constant 0 : i32
    return %arg0, %c0_i32 : i32, i32
  }
}

</mosaic_0001>

<llo_original>
// kernel: tpu_custom_call.1
$region0: #{tpu_custom_call.1}
  #allocation0 [shape = 'u32[]', space=smem, size = 0x4, offset = 0x4, fixed_abs, tag = 'smem constant byte address 0x4 - core index']
  #allocation1 [shape = 'u32[144,128]{1,0:T(1,128)}', space=vmem, size = 0x12000, scoped, tag = 'internal scratch']
  %s0 = inlined_call_operand.hbm [shape: bf16[8,32], index: 0, kind: input, shape index: {}]
  %s1 = inlined_call_operand.hbm [shape: bf16[8,32], index: 1, kind: input, shape index: {}]
  %s2 = inlined_call_operand.hbm [shape: bf16[32,128], index: 2, kind: input, shape index: {}]
  %s3 = inlined_call_operand.vmem [shape: f32[1,128], index: 3, kind: input, shape index: {}]
  %s4 = inlined_call_operand.hbm [shape: f32[1,128], index: 4, kind: output, shape index: {}]
  %s5 = sld [smem:[#allocation0]]
  $region38: #{tpu_custom_call.1} parent=0
    _
  %s7 = ssub.s32 1, %s5
  %s8 = scalar_select 0, %s7, %s5
  $region1: #{tpu_custom_call.1} parent=0
    #allocation2 [shape = 'u8[2048]{0}', space=vmem, size = 0x800, scoped, tag = 'input window, operand 0, single buffered']
    #allocation3 [shape = 's32[1]{0}', space=sflag, size = 0x4, scoped, tag = 'scoped memory for tpu_custom_call.1']
    #allocation4 [shape = 's32[1]{0}', space=sflag, size = 0x4, scoped, tag = 'scoped memory for tpu_custom_call.1']
    #allocation5 [shape = 'u8[2048]{0}', space=vmem, size = 0x800, scoped, tag = 'input window, operand 1, single buffered']
    #allocation6 [shape = 's32[1]{0}', space=sflag, size = 0x4, scoped, tag = 'scoped memory for tpu_custom_call.1']
    #allocation7 [shape = 'u8[8192]{0}', space=vmem, size = 0x2000, scoped, tag = 'input window, operand 2, single buffered']
    #allocation8 [shape = 'u8[512]{0}', space=vmem, size = 0x400, scoped, tag = 'output window, operand 0, single buffered']
    %9 = vsyncpa [#allocation3], 0
    %10 = vsyncpa [#allocation6], 0
    %11 = vsyncpa [#allocation4], 0
    // Predicated region
    $region2: #{tpu_custom_call.1} parent=1 // pred_check
      _
    $region3: #{tpu_custom_call.1} parent=1 // pred_check_branch
      %13 = sbr.rel (0) target = $region5
    $region4: #{tpu_custom_call.1} parent=1 // pred_region
      %s15 = ssub.s32 64, 64
      %16 = vsyncadd [#allocation3], %s15
      %s18 = sshll.u32 [#allocation2], 4
      %s19 = int_to_ptr.vmem [resolvable:$true] %s18
      %21 = dma.hbm_to_vmem [thread:$0]  %s0, 64, %s19, [#allocation3]
    $region5: #{tpu_custom_call.1} parent=1 // pred_fallthru
      _
    // Predicated region
    $region6: #{tpu_custom_call.1} parent=1 // pred_check
      _
    $region7: #{tpu_custom_call.1} parent=1 // pred_check_branch
      %23 = sbr.rel (0) target = $region9
    $region8: #{tpu_custom_call.1} parent=1 // pred_region
      %s25 = ssub.s32 64, 64
      %26 = vsyncadd [#allocation6], %s25
      %s28 = sshll.u32 [#allocation5], 4
      %s29 = int_to_ptr.vmem [resolvable:$true] %s28
      %31 = dma.hbm_to_vmem [thread:$0]  %s1, 64, %s29, [#allocation6]
    $region9: #{tpu_custom_call.1} parent=1 // pred_fallthru
      _
    // Predicated region
    $region10: #{tpu_custom_call.1} parent=1 // pred_check
      _
    $region11: #{tpu_custom_call.1} parent=1 // pred_check_branch
      %33 = sbr.rel (0) target = $region13
    $region12: #{tpu_custom_call.1} parent=1 // pred_region
      %s35 = ssub.s32 256, 256
      %36 = vsyncadd [#allocation6], %s35
      %s37 = sshll.u32 [#allocation7], 4
      %s38 = int_to_ptr.vmem [resolvable:$true] %s37
      %43 = dma.hbm_to_vmem [thread:$0]  %s2, 256, %s38, [#allocation6], 64, 64, 4
    $region13: #{tpu_custom_call.1} parent=1 // pred_fallthru
      _
    // Predicated region
    $region14: #{tpu_custom_call.1} parent=1 // pred_check
      _
    $region15: #{tpu_custom_call.1} parent=1 // pred_check_branch
      %45 = sbr.rel (0) target = $region17
    $region16: #{tpu_custom_call.1} parent=1 // pred_region
      _
    $region17: #{tpu_custom_call.1} parent=1 // pred_fallthru
      _
    // Predicated region
    $region18: #{tpu_custom_call.1} parent=1 // pred_check
      _
    $region19: #{tpu_custom_call.1} parent=1 // pred_check_branch
      %47 = sbr.rel (0) target = $region21
    $region20: #{tpu_custom_call.1} parent=1 // pred_region
      %48 = dma.done [#allocation3], 64
    $region21: #{tpu_custom_call.1} parent=1 // pred_fallthru
      _
    // Predicated region
    $region22: #{tpu_custom_call.1} parent=1 // pred_check
      _
    $region23: #{tpu_custom_call.1} parent=1 // pred_check_branch
      %50 = sbr.rel (0) target = $region25
    $region24: #{tpu_custom_call.1} parent=1 // pred_region
      %51 = dma.done [#allocation6], 64
    $region25: #{tpu_custom_call.1} parent=1 // pred_fallthru
      _
    // Predicated region
    $region26: #{tpu_custom_call.1} parent=1 // pred_check
      _
    $region27: #{tpu_custom_call.1} parent=1 // pred_check_branch
      %53 = sbr.rel (0) target = $region29
    $region28: #{tpu_custom_call.1} parent=1 // pred_region
      %54 = dma.done [#allocation6], 256
    $region29: #{tpu_custom_call.1} parent=1 // pred_fallthru
      _
    %v56 = vld [vmem:[#allocation7] sm:$0xf]
    %v57 = vld [vmem:[#allocation7 + $0x4] sm:$0xf]
    %v58 = vld [vmem:[#allocation7 + $0x8] sm:$0xf]
    %v59 = vld [vmem:[#allocation7 + $0xc] sm:$0xf]
    %v60 = vld [vmem:[%s3] sm:$0x1]
    %v61 = vld [vmem:[#allocation2] sm:$0xf]
    %v63 = vlaneseq
    %v64 = vshrl.u32 %v63, 7
    %v65 = vsub.s32 0, %v64
    %v66 = vrot.slane %v60, %v65
    %v72 = vunpack.c.l.b16 %v56
    %v73 = vunpack.c.l.b16 %v57
    %v74 = vunpack.c.l.b16 %v58
    %v75 = vunpack.c.l.b16 %v59
    %v76 = vpack.c.b16 %v73, %v72
    %v77 = vpack.c.b16 %v75, %v74
    %vm80 = vcmask 261120
    %v82 = vsel %vm80, %v61, 0
    %84 = vmatprep.subr.bf16.mxu0 0
    %85 = vmatpush1.bf16.msra.mxu0 %v76
    %86 = vmatprep.subr.bf16.mxu0 0
    %87 = vmatpush1.bf16.msra.mxu0 %v77
    %88 = vmatprep.subr.bf16.mxu0 0
    %89 = vmatpush1.bf16.msra.mxu0 0
    %90 = vmatprep.subr.bf16.mxu0 0
    %91 = vmatpush1.bf16.msra.mxu0 0
    %92 = vmatprep.subr.bf16.mxu0 0
    %93 = vmatpush1.bf16.msra.mxu0 0
    %94 = vmatprep.subr.bf16.mxu0 0
    %95 = vmatpush1.bf16.msra.mxu0 0
    %96 = vmatprep.subr.bf16.mxu0 0
    %97 = vmatpush1.bf16.msra.mxu0 0
    %98 = vmatprep.subr.bf16.mxu0 0
    %99 = vmatpush1.bf16.msra.mxu0 0
    %100 = vmatprep.subr.bf16.mxu0 0
    %101 = vmatpush1.bf16.msra.mxu0 0
    %102 = vmatprep.subr.bf16.mxu0 0
    %103 = vmatpush1.bf16.msra.mxu0 0
    %104 = vmatprep.subr.bf16.mxu0 0
    %105 = vmatpush1.bf16.msra.mxu0 0
    %106 = vmatprep.subr.bf16.mxu0 0
    %107 = vmatpush1.bf16.msra.mxu0 0
    %108 = vmatprep.subr.bf16.mxu0 0
    %109 = vmatpush1.bf16.msra.mxu0 0
    %110 = vmatprep.subr.bf16.mxu0 0
    %111 = vmatpush1.bf16.msra.mxu0 0
    %112 = vmatprep.subr.bf16.mxu0 0
    %113 = vmatpush1.bf16.msra.mxu0 0
    %114 = vmatprep.subr.bf16.mxu0 0
    %115 = vmatpush1.bf16.msra.mxu0 0
    %116 = vmatprep.mubr.bf16.mxu0 0
    %117 = vmatmul.mubr.bf16.gmra.mrb[0].mxu0 %v82
    %v118 = vpop.f32.mrb[0].mxu0
    %v119 = vadd.f32 %v66, %v118
    %v120 = vpop.f32.mrb[0].mxu0
    %v121 = vpop.f32.mrb[0].mxu0
    %v122 = vpop.f32.mrb[0].mxu0
    %123 = vdwg.mxu0
    %v124 = vld [vmem:[#allocation5] sm:$0xf]
    %v126 = vsel %vm80, %v124, 0
    %128 = vmatprep.subr.bf16.mxu0 0
    %129 = vmatpush1.bf16.msra.mxu0 %v76
    %130 = vmatprep.subr.bf16.mxu0 0
    %131 = vmatpush1.bf16.msra.mxu0 %v77
    %132 = vmatprep.subr.bf16.mxu0 0
    %133 = vmatpush1.bf16.msra.mxu0 0
    %134 = vmatprep.subr.bf16.mxu0 0
    %135 = vmatpush1.bf16.msra.mxu0 0
    %136 = vmatprep.subr.bf16.mxu0 0
    %137 = vmatpush1.bf16.msra.mxu0 0
    %138 = vmatprep.subr.bf16.mxu0 0
    %139 = vmatpush1.bf16.msra.mxu0 0
    %140 = vmatprep.subr.bf16.mxu0 0
    %141 = vmatpush1.bf16.msra.mxu0 0
    %142 = vmatprep.subr.bf16.mxu0 0
    %143 = vmatpush1.bf16.msra.mxu0 0
    %144 = vmatprep.subr.bf16.mxu0 0
    %145 = vmatpush1.bf16.msra.mxu0 0
    %146 = vmatprep.subr.bf16.mxu0 0
    %147 = vmatpush1.bf16.msra.mxu0 0
    %148 = vmatprep.subr.bf16.mxu0 0
    %149 = vmatpush1.bf16.msra.mxu0 0
    %150 = vmatprep.subr.bf16.mxu0 0
    %151 = vmatpush1.bf16.msra.mxu0 0
    %152 = vmatprep.subr.bf16.mxu0 0
    %153 = vmatpush1.bf16.msra.mxu0 0
    %154 = vmatprep.subr.bf16.mxu0 0
    %155 = vmatpush1.bf16.msra.mxu0 0
    %156 = vmatprep.subr.bf16.mxu0 0
    %157 = vmatpush1.bf16.msra.mxu0 0
    %158 = vmatprep.subr.bf16.mxu0 0
    %159 = vmatpush1.bf16.msra.mxu0 0
    %160 = vmatprep.mubr.bf16.mxu0 0
    %161 = vmatmul.mubr.bf16.gmra.mrb[0].mxu0 %v126
    %v162 = vpop.f32.mrb[0].mxu0
    %v163 = vadd.f32 %v66, %v162
    %v164 = vpop.f32.mrb[0].mxu0
    %v165 = vpop.f32.mrb[0].mxu0
    %v166 = vpop.f32.mrb[0].mxu0
    %167 = vdwg.mxu0
    %v168 = vlaneseq
    %v169 = vand.u32 %v168, 127
    %170 = vmax.xlane.f32.xlu0 %v163
    %v171 = vpop.xlane.xlu0 %170
    %vm172 = vcmp.eq.f32.partialorder %v163, %v171
    %v173 = vsel %vm172, %v169, 128
    %v174 = vand.u32 %v173, 65535
    %v175 = vshra.s32 %v173, 16
    %v176 = vcvt.s32.f32 %v174
    %v177 = vcvt.s32.f32 %v175
    %178 = vmin.xlane.f32.xlu0 %v177
    %v179 = vpop.xlane.xlu0 %178
    %vm180 = vcmp.eq.f32.partialorder %v177, %v179
    %v181 = vsel %vm180, %v176, inf
    %182 = vmin.xlane.f32.xlu0 %v181
    %v183 = vpop.xlane.xlu0 %182
    %v184 = vcvt.f32.s32 %v183
    %v185 = vcvt.f32.s32 %v179
    %v186 = vshll.u32 %v185, 16
    %v187 = vadd.s32 %v186, %v184
    %vm188 = vcmp.eq.s32.totalorder %v169, %v187
    %v189 = vsel %vm188, %v119, 0.0
    %190 = vadd.xlane.f32.xlu0 %v189
    %v191 = vpop.xlane.xlu0 %190
    %192 = vmax.xlane.f32.xlu0 %v119
    %v193 = vpop.xlane.xlu0 %192
    %v194 = vsub.f32 %v119, %v193
    %v195 = vmul.f32 %v194, 1.442695
    %v196 = vpow.pop %v195
    %197 = vadd.xlane.f32.xlu0 %v196
    %v198 = vpop.xlane.xlu0 %197
    %v199 = vlog2.pop %v198
    %v200 = vmul.f32 %v199, 0.6931472
    %v201 = vadd.f32 %v193, %v200
    %v202 = vsub.f32 %v201, %v191
    %v203 = vrot.slane %v202, 4
    %v204 = vadd.f32 %v202, %v203
    %v205 = vrot.slane %v204, 2
    %v206 = vadd.f32 %v204, %v205
    %v207 = vrot.slane %v206, 1
    %v208 = vadd.f32 %v206, %v207
    %209 = vst [vmem:[#allocation8] sm:$0x1] %v208
    // Predicated region
    $region30: #{tpu_custom_call.1} parent=1 // pred_check
      _
    $region31: #{tpu_custom_call.1} parent=1 // pred_check_branch
      %211 = sbr.rel (0) target = $region33
    $region32: #{tpu_custom_call.1} parent=1 // pred_region
      %s213 = ssub.s32 16, 16
      %214 = vsyncadd [#allocation4], %s213
      %s216 = sshll.u32 [#allocation8], 4
      %s217 = int_to_ptr.vmem [resolvable:$true] %s216
      %219 = dma.vmem_to_hbm [thread:$0]  %s217, 16, %s4, [#allocation4]
    $region33: #{tpu_custom_call.1} parent=1 // pred_fallthru
      _
    // Predicated region
    $region34: #{tpu_custom_call.1} parent=1 // pred_check
      _
    $region35: #{tpu_custom_call.1} parent=1 // pred_check_branch
      %221 = sbr.rel (0) target = $region37
    $region36: #{tpu_custom_call.1} parent=1 // pred_region
      %222 = dma.done [#allocation4], 16
    $region37: #{tpu_custom_call.1} parent=1 // pred_fallthru
      _
    %223 = vsyncpa [#allocation3], 1
    %224 = vsyncpa [#allocation6], 1
    %225 = vsyncpa [#allocation4], 1

</llo_original>
